<compile_context>
chip_gen: v5e
topology: v5e:2x2
jax: 0.10.0
libtpu: 0.0.40
codegen_flags: <defaults>
</compile_context>

<pallas_src>
from functools import partial

import jax
import jax.numpy as jnp
from jax.experimental import pallas as pl
from jax.experimental.pallas import tpu as pltpu


# ----------------------------------------------------------------------------
# Pallas kernel: whole StackTGM hot path, gridless, all operands VMEM resident.
# ----------------------------------------------------------------------------
def stacktgm_kernel(ft_ref, m_ref, wh1_ref, wh2_ref, bh_ref, wc_ref, bc_ref,
                    out_ref):
    # ft_ref : (B*T, D)       bf16  input features, transposed + batch-folded
    # m_ref  : (c*T, T)       bf16  fused TGM1->2->3 Toeplitz (batch-independent)
    # wh1_ref: (D, H)         bf16  1x1 conv `h` weight, rows for the `f` half
    # wh2_ref: (D, H)         bf16  1x1 conv `h` weight, rows for the max half
    # bh_ref : (1, H)         f32
    # wc_ref : (H, CLS_PAD)   bf16  `classify` weight, zero-padded to 128 lanes
    # bc_ref : (1, CLS_PAD)   f32
    # out_ref: (B*T, CLS_PAD) f32   lane-dense padded output
    ft = ft_ref[...]                                   # (B*T, D) bf16
    m = m_ref[...]                                     # (c*T, T) bf16
    bt, d = ft.shape
    ct, t = m.shape
    c = ct // t
    b = bt // t

    # Per-batch fused TGM stack + max over the c output channels.
    # s3[o*T + t, d] == sub_event3[b, o, d, t]
    mx_parts = []
    for bi in range(b):                                # static loop, B is tiny
        ft_b = ft[bi * t:(bi + 1) * t, :]              # aligned sublane slice
        s3 = jnp.dot(m, ft_b, preferred_element_type=jnp.float32)  # (c*T, D) f32
        mx_parts.append(jnp.max(s3.reshape(c, t, d), axis=0))      # (T, D) f32
    mx = jnp.concatenate(mx_parts, axis=0)             # (B*T, D) f32

    # relu(cat([f, mx], lanes)) @ WhT  ==  relu(f) @ Wh1T + relu(mx) @ Wh2T
    relu_f = jnp.maximum(ft, 0)                        # bf16
    relu_mx = jnp.maximum(mx, 0.0).astype(jnp.bfloat16)
    hid = (jnp.dot(relu_f, wh1_ref[...], preferred_element_type=jnp.float32)
           + jnp.dot(relu_mx, wh2_ref[...], preferred_element_type=jnp.float32)
           + bh_ref[...])                              # (B*T, H) f32
    hid = jnp.maximum(hid, 0.0).astype(jnp.bfloat16)

    # Lane-dense padded classifier head (unmasked stores).
    out = jnp.dot(hid, wc_ref[...], preferred_element_type=jnp.float32) \
        + bc_ref[...]
    out_ref[...] = out.astype(out_ref.dtype)           # (B*T, CLS_PAD)


# ----------------------------------------------------------------------------
# One-time weight fold (NOT in the per-call path): convs -> Toeplitz -> fused.
# ----------------------------------------------------------------------------
def toeplitz_from_kernel(k, T):
    """'same'-padded temporal conv kernel -> (c_out, c_in, T, T) Toeplitz."""
    c_out, c_in, L = k.shape
    pad = L // 2
    s = jnp.arange(T)[:, None]
    t = jnp.arange(T)[None, :]
    idx = s - t + pad                              # out[t] = sum_s x[s]*k[s-t+pad]
    valid = ((idx >= 0) & (idx < L)).astype(k.dtype)
    idx_c = jnp.clip(idx, 0, L - 1)
    return k[:, :, idx_c] * valid[None, None, :, :]


def _block_toeplitz(M):
    """(c_out, c_in, T, T) -> (c_in*T, c_out*T) so conv == right-matmul."""
    c_out, c_in, T, _ = M.shape
    return M.transpose(1, 2, 0, 3).reshape(c_in * T, c_out * T)


def fold_stack_tgm_params(k1, k2, k3, Wh, bh, Wc, bc, T, cls_pad=128):
    """Fold the 3 linear TGM layers + repack all weights for the kernel.

    Call this ONCE (weights are fixed at inference); the per-call forward only
    transposes the input and launches the Pallas kernel.
    """
    hp = jax.lax.Precision.HIGHEST                     # keep the fold at full f32
    M1b = _block_toeplitz(toeplitz_from_kernel(k1, T))             # (T,    c1*T)
    M2b = _block_toeplitz(toeplitz_from_kernel(k2, T))             # (c1*T, c2*T)
    M3b = _block_toeplitz(toeplitz_from_kernel(k3, T))             # (c2*T, c*T)
    M123 = jnp.matmul(jnp.matmul(M1b, M2b, precision=hp), M3b, precision=hp)
    c = M123.shape[1] // T
    # m2d[o*T + t, s] = M123[s, o*T + t]  (batch-independent, used per batch)
    m2d = M123.reshape(T, c, T).transpose(1, 2, 0).reshape(c * T, T)

    D = Wh.shape[1] // 2
    hidden = Wh.shape[0]
    classes = Wc.shape[0]
    wh1t = Wh[:, :D].T                                              # (D, H)
    wh2t = Wh[:, D:].T                                              # (D, H)
    wct_pad = jnp.zeros((hidden, cls_pad), jnp.float32).at[:, :classes].set(Wc.T)
    bc_pad = jnp.zeros((1, cls_pad), jnp.float32).at[:, :classes].set(
        bc.reshape(1, -1))

    return (m2d.astype(jnp.bfloat16),
            wh1t.astype(jnp.bfloat16),
            wh2t.astype(jnp.bfloat16),
            bh.reshape(1, -1).astype(jnp.float32),
            wct_pad.astype(jnp.bfloat16),
            bc_pad.astype(jnp.float32))


# ----------------------------------------------------------------------------
# Per-call forward: layout plumbing + single pallas_call.
# ----------------------------------------------------------------------------
@partial(jax.jit, static_argnames=("classes",))
def stack_tgm_apply(f, m2d, wh1t, wh2t, bh_row, wct_pad, bc_pad, *, classes):
    """f: (B, D, T) features; remaining args from fold_stack_tgm_params."""
    B, D, T = f.shape
    cls_pad = wct_pad.shape[1]
    ft = f.transpose(0, 2, 1).reshape(B * T, D).astype(jnp.bfloat16)  # (B*T, D)

    vmem = pl.BlockSpec(memory_space=pltpu.MemorySpace.VMEM)
    out_pad = pl.pallas_call(
        stacktgm_kernel,
        out_shape=jax.ShapeDtypeStruct((B * T, cls_pad), jnp.float32),
        in_specs=[vmem] * 7,
        out_specs=pl.BlockSpec(memory_space=pltpu.MemorySpace.VMEM),
        # Explicit limit (v5e scoped default is 16 MiB); footprint here ~1 MiB.
        compiler_params=pltpu.CompilerParams(vmem_limit_bytes=32 * 1024 * 1024),
    )(ft, m2d, wh1t, wh2t, bh_row, wct_pad, bc_pad)

    # Un-pad the lane dimension; (B*T, classes) -> (B, classes, T) like PyTorch.
    return out_pad[:, :classes].reshape(B, T, classes).transpose(0, 2, 1)


def tgm_conv_kernel(center, gamma, soft_attn, num_f, length, c_in, c_out):
    """Build the (c_out, c_in, length) temporal kernel of a TGM layer."""
    centers = (length - 1) * (jnp.tanh(center) + 1.0) / 2.0        # (num_f,)
    gammas = jnp.exp(1.5 - 2.0 * jnp.abs(jnp.tanh(gamma)))         # (num_f,)
    pos = jnp.arange(length, dtype=jnp.float32)
    dist = pos[None, :] - centers[:, None]                         # (num_f, L)
    filt = jnp.exp(-(dist ** 2) / (2.0 * gammas[:, None] ** 2))
    filt = filt / jnp.sum(filt, axis=1, keepdims=True)
    attn = jax.nn.softmax(soft_attn, axis=1)                       # (c_out, c_in*num_f)
    k = jnp.tile(filt, (c_in, 1))                                  # (c_in*num_f, L)
    k = attn[:, :, None] * k[None, :, :]                           # (c_out, c_in*num_f, L)
    return k.reshape(c_out, c_in, num_f, length).sum(axis=2)       # (c_out, c_in, L)


# ----------------------------------------------------------------------------
# Pure-JAX f32 reference (direct conv form) for correctness checking.
# ----------------------------------------------------------------------------
def reference_forward(f, k1, k2, k3, Wh, bh, Wc, bc):
    hp = jax.lax.Precision.HIGHEST

    def conv_t(x, k):                     # x: (B, ci, D, T), k: (co, ci, L)
        pad = k.shape[-1] // 2
        T = x.shape[-1]
        xp = jnp.pad(x, ((0, 0), (0, 0), (0, 0), (pad, pad)))
        out = jnp.zeros((x.shape[0], k.shape[0], x.shape[2], T), jnp.float32)
        for l in range(k.shape[-1]):
            out = out + jnp.einsum('bidt,oi->bodt', xp[..., l:l + T],
                                   k[:, :, l], precision=hp)
        return out

    x = f[:, None]                        # (B, 1, D, T)
    s = conv_t(conv_t(conv_t(x, k1), k2), k3)
    m = jnp.max(s, axis=1)                # (B, D, T)
    cls_in = jax.nn.relu(jnp.concatenate([f, m], axis=1))          # (B, 2D, T)
    hid = jax.nn.relu(jnp.einsum('oc,bct->bot', Wh, cls_in, precision=hp)
                      + bh[None, :, None])
    return (jnp.einsum('oc,bct->bot', Wc, hid, precision=hp)
            + bc[None, :, None])


# ----------------------------------------------------------------------------
if __name__ == "__main__":
    key = jax.random.PRNGKey(0)
    ks = jax.random.split(key, 16)

    B, D, T = 2, 32, 16          # batch, feature dim (inp), time steps
    classes = 8
    num_f, length = 16, 5        # TGM(inp, 16, 5, ...)
    hidden = 512

    # Input features (after squeeze in the PyTorch forward): (B, D, T)
    f = jax.random.normal(ks[0], (B, D, T), dtype=jnp.float32)

    # ---- TGM parameters (deterministic, matching torch init scales) ----
    def tgm_params(kc, kg, ka, c_in, c_out):
        center = 0.5 * jax.random.normal(kc, (num_f,), jnp.float32)
        gamma = 1e-4 * jax.random.normal(kg, (num_f,), jnp.float32)
        attn = 0.01 * jax.random.normal(ka, (c_out, c_in * num_f), jnp.float32)
        return center, gamma, attn

    c1p, g1p, a1p = tgm_params(ks[1], ks[2], ks[3], c_in=1, c_out=8)
    c2p, g2p, a2p = tgm_params(ks[4], ks[5], ks[6], c_in=8, c_out=8)
    c3p, g3p, a3p = tgm_params(ks[7], ks[8], ks[9], c_in=8, c_out=8)

    k1 = tgm_conv_kernel(c1p, g1p, a1p, num_f, length, 1, 8)   # (8, 1, 5)
    k2 = tgm_conv_kernel(c2p, g2p, a2p, num_f, length, 8, 8)   # (8, 8, 5)
    k3 = tgm_conv_kernel(c3p, g3p, a3p, num_f, length, 8, 8)   # (8, 8, 5)

    # ---- 1x1 conv (h) and classifier parameters ----
    Wh = 0.05 * jax.random.normal(ks[10], (hidden, 2 * D), jnp.float32)
    bh = 0.05 * jax.random.normal(ks[11], (hidden,), jnp.float32)
    Wc = 0.05 * jax.random.normal(ks[12], (classes, hidden), jnp.float32)
    bc = 0.05 * jax.random.normal(ks[13], (classes,), jnp.float32)

    # One-time weight fold (hoisted out of the per-call path).
    folded = fold_stack_tgm_params(k1, k2, k3, Wh, bh, Wc, bc, T)
    folded = jax.tree_util.tree_map(jax.block_until_ready, folded)

    out = jax.block_until_ready(stack_tgm_apply(f, *folded, classes=classes))
    ref = jax.block_until_ready(reference_forward(f, k1, k2, k3, Wh, bh, Wc, bc))

    assert out.shape == (B, classes, T), out.shape
    # bf16 MXU operands with f32 accumulation -> looser tolerance than all-f32.
    assert jnp.allclose(out, ref, rtol=5e-2, atol=5e-2), (
        float(jnp.max(jnp.abs(out - ref))))

    print("KERNEL_OK")
</pallas_src>

<mosaic_0001>
module attributes {stable_mosaic.version = 11 : i64} {
  func.func @stacktgm_kernel(%arg0: memref<32x32xbf16, #tpu.memory_space<vmem>>, %arg1: memref<128x16xbf16, #tpu.memory_space<vmem>>, %arg2: memref<32x512xbf16, #tpu.memory_space<vmem>>, %arg3: memref<32x512xbf16, #tpu.memory_space<vmem>>, %arg4: memref<1x512xf32, #tpu.memory_space<vmem>>, %arg5: memref<512x128xbf16, #tpu.memory_space<vmem>>, %arg6: memref<1x128xf32, #tpu.memory_space<vmem>>, %arg7: memref<32x128xf32, #tpu.memory_space<vmem>>) attributes {dimension_semantics = [], scalar_prefetch = 0 : i64, scratch_operands = 0 : i64, tpu.core_type = #tpu.core_type<tc>} {
    %c0 = arith.constant 0 : index
    %c0_0 = arith.constant 0 : index
    %0 = vector.load %arg0[%c0, %c0_0] : memref<32x32xbf16, #tpu.memory_space<vmem>>, vector<32x32xbf16>
    %c0_1 = arith.constant 0 : index
    %c0_2 = arith.constant 0 : index
    %1 = vector.load %arg1[%c0_1, %c0_2] : memref<128x16xbf16, #tpu.memory_space<vmem>>, vector<128x16xbf16>
    %2 = vector.extract_strided_slice %0 {offsets = [0, 0], sizes = [16, 32], strides = [1, 1]} : vector<32x32xbf16> to vector<16x32xbf16>
    %cst = arith.constant dense<0.000000e+00> : vector<128x32xf32>
    %3 = tpu.matmul %1, %2, %cst {dimension_numbers = #tpu.dot_dimension_numbers<[1], [0], [0], [1], [0, 0, 1, 1], [], []>} : vector<128x16xbf16>, vector<16x32xbf16>, vector<128x32xf32> -> vector<128x32xf32>
    %4 = vector.shape_cast %3 : vector<128x32xf32> to vector<8x16x32xf32>
    %cst_3 = arith.constant dense<0xFF800000> : vector<16x32xf32>
    %5 = vector.multi_reduction <maximumf>, %4, %cst_3 [0] : vector<8x16x32xf32> to vector<16x32xf32>
    %6 = vector.extract_strided_slice %0 {offsets = [16, 0], sizes = [16, 32], strides = [1, 1]} : vector<32x32xbf16> to vector<16x32xbf16>
    %cst_4 = arith.constant dense<0.000000e+00> : vector<128x32xf32>
    %7 = tpu.matmul %1, %6, %cst_4 {dimension_numbers = #tpu.dot_dimension_numbers<[1], [0], [0], [1], [0, 0, 1, 1], [], []>} : vector<128x16xbf16>, vector<16x32xbf16>, vector<128x32xf32> -> vector<128x32xf32>
    %8 = vector.shape_cast %7 : vector<128x32xf32> to vector<8x16x32xf32>
    %cst_5 = arith.constant dense<0xFF800000> : vector<16x32xf32>
    %9 = vector.multi_reduction <maximumf>, %8, %cst_5 [0] : vector<8x16x32xf32> to vector<16x32xf32>
    %10 = tpu.concatenate %5, %9 in 0 : vector<16x32xf32>, vector<16x32xf32> -> vector<32x32xf32>
    %cst_6 = arith.constant 0.000000e+00 : bf16
    %11 = vector.broadcast %cst_6 : bf16 to vector<32x32xbf16>
    %12 = arith.maximumf %0, %11 : vector<32x32xbf16>
    %cst_7 = arith.constant 0.000000e+00 : f32
    %13 = vector.broadcast %cst_7 : f32 to vector<32x32xf32>
    %14 = arith.maximumf %10, %13 : vector<32x32xf32>
    %15 = arith.truncf %14 : vector<32x32xf32> to vector<32x32xbf16>
    %c0_8 = arith.constant 0 : index
    %c0_9 = arith.constant 0 : index
    %16 = vector.load %arg2[%c0_8, %c0_9] : memref<32x512xbf16, #tpu.memory_space<vmem>>, vector<32x512xbf16>
    %cst_10 = arith.constant dense<0.000000e+00> : vector<32x512xf32>
    %17 = tpu.matmul %12, %16, %cst_10 {dimension_numbers = #tpu.dot_dimension_numbers<[1], [0], [0], [1], [0, 0, 1, 1], [], []>} : vector<32x32xbf16>, vector<32x512xbf16>, vector<32x512xf32> -> vector<32x512xf32>
    %c0_11 = arith.constant 0 : index
    %c0_12 = arith.constant 0 : index
    %18 = vector.load %arg3[%c0_11, %c0_12] : memref<32x512xbf16, #tpu.memory_space<vmem>>, vector<32x512xbf16>
    %cst_13 = arith.constant dense<0.000000e+00> : vector<32x512xf32>
    %19 = tpu.matmul %15, %18, %cst_13 {dimension_numbers = #tpu.dot_dimension_numbers<[1], [0], [0], [1], [0, 0, 1, 1], [], []>} : vector<32x32xbf16>, vector<32x512xbf16>, vector<32x512xf32> -> vector<32x512xf32>
    %20 = arith.addf %17, %19 : vector<32x512xf32>
    %c0_14 = arith.constant 0 : index
    %c0_15 = arith.constant 0 : index
    %21 = vector.load %arg4[%c0_14, %c0_15] : memref<1x512xf32, #tpu.memory_space<vmem>>, vector<1x512xf32>
    %22 = vector.broadcast %21 : vector<1x512xf32> to vector<32x512xf32>
    %23 = arith.addf %20, %22 : vector<32x512xf32>
    %cst_16 = arith.constant 0.000000e+00 : f32
    %24 = vector.broadcast %cst_16 : f32 to vector<32x512xf32>
    %25 = arith.maximumf %23, %24 : vector<32x512xf32>
    %26 = arith.truncf %25 : vector<32x512xf32> to vector<32x512xbf16>
    %c0_17 = arith.constant 0 : index
    %c0_18 = arith.constant 0 : index
    %27 = vector.load %arg5[%c0_17, %c0_18] : memref<512x128xbf16, #tpu.memory_space<vmem>>, vector<512x128xbf16>
    %cst_19 = arith.constant dense<0.000000e+00> : vector<32x128xf32>
    %28 = tpu.matmul %26, %27, %cst_19 {dimension_numbers = #tpu.dot_dimension_numbers<[1], [0], [0], [1], [0, 0, 1, 1], [], []>} : vector<32x512xbf16>, vector<512x128xbf16>, vector<32x128xf32> -> vector<32x128xf32>
    %c0_20 = arith.constant 0 : index
    %c0_21 = arith.constant 0 : index
    %29 = vector.load %arg6[%c0_20, %c0_21] : memref<1x128xf32, #tpu.memory_space<vmem>>, vector<1x128xf32>
    %30 = vector.broadcast %29 : vector<1x128xf32> to vector<32x128xf32>
    %31 = arith.addf %28, %30 : vector<32x128xf32>
    %c0_22 = arith.constant 0 : index
    %c0_23 = arith.constant 0 : index
    %32 = vector.load %arg7[%c0_22, %c0_23] : memref<32x128xf32, #tpu.memory_space<vmem>>, vector<32x128xf32>
    tpu.vector_store %arg7[%c0_22, %c0_23], %31 {strides = array<i32>} : memref<32x128xf32, #tpu.memory_space<vmem>>, vector<32x128xf32>,
    return
  }
}

</mosaic_0001>

<llo_original>
// kernel: stack_tgm_apply.1
$region0: #{stack_tgm_apply.1}
  #allocation0 [shape = 'u32[]', space=smem, size = 0x4, offset = 0x4, fixed_abs, tag = 'smem constant byte address 0x4 - core index']
  #allocation1 [shape = 'u32[72,128]{1,0:T(1,128)}', space=vmem, size = 0x9000, scoped, tag = 'internal scratch']
  %s0 = inlined_call_operand.vmem [shape: bf16[32,32], index: 0, kind: input, shape index: {}]
  %s1 = inlined_call_operand.vmem [shape: bf16[128,16], index: 1, kind: input, shape index: {}]
  %s2 = inlined_call_operand.vmem [shape: bf16[32,512], index: 2, kind: input, shape index: {}]
  %s3 = inlined_call_operand.hbm [shape: bf16[32,512], index: 3, kind: input, shape index: {}]
  %s4 = inlined_call_operand.vmem [shape: f32[1,512], index: 4, kind: input, shape index: {}]
  %s5 = inlined_call_operand.hbm [shape: bf16[512,128], index: 5, kind: input, shape index: {}]
  %s6 = inlined_call_operand.vmem [shape: f32[1,128], index: 6, kind: input, shape index: {}]
  %s7 = inlined_call_operand.vmem [shape: f32[32,128], index: 7, kind: output, shape index: {}]
  %s8 = sld [smem:[#allocation0]]
  $region46: #{stack_tgm_apply.1} parent=0
    _
  %s10 = ssub.s32 1, %s8
  %s11 = scalar_select 0, %s10, %s8
  $region1: #{stack_tgm_apply.1} parent=0
    #allocation2 [shape = 'u8[32768]{0}', space=vmem, size = 0x8000, scoped, tag = 'input window, operand 3, single buffered']
    #allocation3 [shape = 's32[1]{0}', space=sflag, size = 0x4, scoped, tag = 'scoped memory for stack_tgm_apply.1']
    #allocation4 [shape = 'u8[131072]{0}', space=vmem, size = 0x20000, scoped, tag = 'input window, operand 5, single buffered']
    #allocation5 [shape = 's32[1]{0}', space=sflag, size = 0x4, scoped, tag = 'scoped memory for stack_tgm_apply.1']
    %12 = vsyncpa [#allocation3], 0
    %13 = vsyncpa [#allocation5], 0
    // Predicated region
    $region2: #{stack_tgm_apply.1} parent=1 // pred_check
      _
    $region3: #{stack_tgm_apply.1} parent=1 // pred_check_branch
      %15 = sbr.rel (0) target = $region5
    $region4: #{stack_tgm_apply.1} parent=1 // pred_region
      _
    $region5: #{stack_tgm_apply.1} parent=1 // pred_fallthru
      _
    // Predicated region
    $region6: #{stack_tgm_apply.1} parent=1 // pred_check
      _
    $region7: #{stack_tgm_apply.1} parent=1 // pred_check_branch
      %17 = sbr.rel (0) target = $region9
    $region8: #{stack_tgm_apply.1} parent=1 // pred_region
      _
    $region9: #{stack_tgm_apply.1} parent=1 // pred_fallthru
      _
    // Predicated region
    $region10: #{stack_tgm_apply.1} parent=1 // pred_check
      _
    $region11: #{stack_tgm_apply.1} parent=1 // pred_check_branch
      %19 = sbr.rel (0) target = $region13
    $region12: #{stack_tgm_apply.1} parent=1 // pred_region
      _
    $region13: #{stack_tgm_apply.1} parent=1 // pred_fallthru
      _
    // Predicated region
    $region14: #{stack_tgm_apply.1} parent=1 // pred_check
      _
    $region15: #{stack_tgm_apply.1} parent=1 // pred_check_branch
      %21 = sbr.rel (0) target = $region17
    $region16: #{stack_tgm_apply.1} parent=1 // pred_region
      %23 = vsyncadd [#allocation3], 0
      %s24 = sshll.u32 %s3, 4
      %s25 = int_to_ptr.hbm [resolvable:$true] %s24
      %s26 = sshll.u32 [#allocation2], 4
      %s27 = int_to_ptr.vmem [resolvable:$true] %s26
      %32 = dma.hbm_to_vmem [thread:$0]  %s25, 1024, %s27, [#allocation3], 256, 256, 16
    $region17: #{stack_tgm_apply.1} parent=1 // pred_fallthru
      _
    // Predicated region
    $region18: #{stack_tgm_apply.1} parent=1 // pred_check
      _
    $region19: #{stack_tgm_apply.1} parent=1 // pred_check_branch
      %34 = sbr.rel (0) target = $region21
    $region20: #{stack_tgm_apply.1} parent=1 // pred_region
      _
    $region21: #{stack_tgm_apply.1} parent=1 // pred_fallthru
      _
    // Predicated region
    $region22: #{stack_tgm_apply.1} parent=1 // pred_check
      _
    $region23: #{stack_tgm_apply.1} parent=1 // pred_check_branch
      %36 = sbr.rel (0) target = $region25
    $region24: #{stack_tgm_apply.1} parent=1 // pred_region
      %38 = vsyncadd [#allocation5], 0
      %s39 = sshll.u32 %s5, 4
      %s40 = int_to_ptr.hbm [resolvable:$true] %s39
      %s41 = sshll.u32 [#allocation4], 4
      %s42 = int_to_ptr.vmem [resolvable:$true] %s41
      %47 = dma.hbm_to_vmem [thread:$0]  %s40, 4096, %s42, [#allocation5], 64, 64, 4
    $region25: #{stack_tgm_apply.1} parent=1 // pred_fallthru
      _
    // Predicated region
    $region26: #{stack_tgm_apply.1} parent=1 // pred_check
      _
    $region27: #{stack_tgm_apply.1} parent=1 // pred_check_branch
      %49 = sbr.rel (0) target = $region29
    $region28: #{stack_tgm_apply.1} parent=1 // pred_region
      _
    $region29: #{stack_tgm_apply.1} parent=1 // pred_fallthru
      _
    // Predicated region
    $region30: #{stack_tgm_apply.1} parent=1 // pred_check
      _
    $region31: #{stack_tgm_apply.1} parent=1 // pred_check_branch
      %51 = sbr.rel (0) target = $region33
    $region32: #{stack_tgm_apply.1} parent=1 // pred_region
      %53 = dma.done [#allocation3], 1024
    $region33: #{stack_tgm_apply.1} parent=1 // pred_fallthru
      _
    // Predicated region
    $region34: #{stack_tgm_apply.1} parent=1 // pred_check
      _
    $region35: #{stack_tgm_apply.1} parent=1 // pred_check_branch
      %55 = sbr.rel (0) target = $region37
    $region36: #{stack_tgm_apply.1} parent=1 // pred_region
      %57 = dma.done [#allocation5], 4096
    $region37: #{stack_tgm_apply.1} parent=1 // pred_fallthru
      _
    %v59 = vld [vmem:[%s0] sm:$0xf]
    %v60 = vld [vmem:[%s0 + $0x4] sm:$0xf]
    %v61 = vld [vmem:[%s0 + $0x8] sm:$0xf]
    %v62 = vld [vmem:[%s0 + $0xc] sm:$0xf]
    %v63 = vld [vmem:[%s1] sm:$0xf]
    %v64 = vld [vmem:[%s1 + $0x4] sm:$0xf]
    %v65 = vld [vmem:[%s1 + $0x8] sm:$0xf]
    %v66 = vld [vmem:[%s1 + $0xc] sm:$0xf]
    %v67 = vld [vmem:[%s1 + $0x10] sm:$0xf]
    %v68 = vld [vmem:[%s1 + $0x14] sm:$0xf]
    %v69 = vld [vmem:[%s1 + $0x18] sm:$0xf]
    %v70 = vld [vmem:[%s1 + $0x1c] sm:$0xf]
    %v71 = vld [vmem:[%s1 + $0x20] sm:$0xf]
    %v72 = vld [vmem:[%s1 + $0x24] sm:$0xf]
    %v73 = vld [vmem:[%s1 + $0x28] sm:$0xf]
    %v74 = vld [vmem:[%s1 + $0x2c] sm:$0xf]
    %v75 = vld [vmem:[%s1 + $0x30] sm:$0xf]
    %v76 = vld [vmem:[%s1 + $0x34] sm:$0xf]
    %v77 = vld [vmem:[%s1 + $0x38] sm:$0xf]
    %v78 = vld [vmem:[%s1 + $0x3c] sm:$0xf]
    %v95 = vunpack.c.l.b16 %v63
    %v96 = vunpack.c.l.b16 %v64
    %v97 = vunpack.c.l.b16 %v65
    %v98 = vunpack.c.l.b16 %v66
    %v99 = vunpack.c.l.b16 %v67
    %v100 = vunpack.c.l.b16 %v68
    %v101 = vunpack.c.l.b16 %v69
    %v102 = vunpack.c.l.b16 %v70
    %v103 = vunpack.c.l.b16 %v71
    %v104 = vunpack.c.l.b16 %v72
    %v105 = vunpack.c.l.b16 %v73
    %v106 = vunpack.c.l.b16 %v74
    %v107 = vunpack.c.l.b16 %v75
    %v108 = vunpack.c.l.b16 %v76
    %v109 = vunpack.c.l.b16 %v77
    %v110 = vunpack.c.l.b16 %v78
    %v111 = vpack.c.b16 %v96, %v95
    %v112 = vpack.c.b16 %v98, %v97
    %v113 = vpack.c.b16 %v100, %v99
    %v114 = vpack.c.b16 %v102, %v101
    %v115 = vpack.c.b16 %v104, %v103
    %v116 = vpack.c.b16 %v106, %v105
    %v117 = vpack.c.b16 %v108, %v107
    %v118 = vpack.c.b16 %v110, %v109
    %v121 = vunpack.c.l.b16 %v59
    %v122 = vunpack.c.l.b16 %v60
    %v123 = vpack.c.b16 %v122, %v121
    %vm125 = vcmask 130048
    %v127 = vsel %vm125, %v111, 0
    %v130 = vsel %vm125, %v112, 0
    %v133 = vsel %vm125, %v113, 0
    %v136 = vsel %vm125, %v114, 0
    %v139 = vsel %vm125, %v115, 0
    %v142 = vsel %vm125, %v116, 0
    %v145 = vsel %vm125, %v117, 0
    %v148 = vsel %vm125, %v118, 0
    %150 = vmatpush.bf16.msra.mxu0 0
    %151 = vmatpush.bf16.msra.mxu0 0
    %152 = vmatpush.bf16.msra.mxu0 0
    %153 = vmatpush.bf16.msra.mxu0 0
    %154 = vmatpush.bf16.msra.mxu0 0
    %155 = vmatpush.bf16.msra.mxu0 0
    %156 = vmatpush.bf16.msra.mxu0 0
    %157 = vmatpush.bf16.msra.mxu0 %v123
    %158 = vmatmul.bf16.gmra.mxu0 %v127
    %v159 = vpop.f32.mrf.mxu0
    %v160 = vadd.f32 0.0, %v159
    %v161 = vpop.f32.mrf.mxu0
    %v162 = vadd.f32 0.0, %v161
    %163 = vmatmul.bf16.gmra.mxu0 %v130
    %v164 = vpop.f32.mrf.mxu0
    %v165 = vadd.f32 0.0, %v164
    %v166 = vpop.f32.mrf.mxu0
    %v167 = vadd.f32 0.0, %v166
    %168 = vmatmul.bf16.gmra.mxu0 %v133
    %v169 = vpop.f32.mrf.mxu0
    %v170 = vadd.f32 0.0, %v169
    %v171 = vpop.f32.mrf.mxu0
    %v172 = vadd.f32 0.0, %v171
    %173 = vmatmul.bf16.gmra.mxu0 %v136
    %v174 = vpop.f32.mrf.mxu0
    %v175 = vadd.f32 0.0, %v174
    %v176 = vpop.f32.mrf.mxu0
    %v177 = vadd.f32 0.0, %v176
    %178 = vmatmul.bf16.gmra.mxu0 %v139
    %v179 = vpop.f32.mrf.mxu0
    %v180 = vadd.f32 0.0, %v179
    %v181 = vpop.f32.mrf.mxu0
    %v182 = vadd.f32 0.0, %v181
    %183 = vmatmul.bf16.gmra.mxu0 %v142
    %v184 = vpop.f32.mrf.mxu0
    %v185 = vadd.f32 0.0, %v184
    %v186 = vpop.f32.mrf.mxu0
    %v187 = vadd.f32 0.0, %v186
    %188 = vmatmul.bf16.gmra.mxu0 %v145
    %v189 = vpop.f32.mrf.mxu0
    %v190 = vadd.f32 0.0, %v189
    %v191 = vpop.f32.mrf.mxu0
    %v192 = vadd.f32 0.0, %v191
    %193 = vmatmul.bf16.gmra.mxu0 %v148
    %v194 = vpop.f32.mrf.mxu0
    %v195 = vadd.f32 0.0, %v194
    %v196 = vpop.f32.mrf.mxu0
    %v197 = vadd.f32 0.0, %v196
    %198 = vdwg.mxu0
    %vm199 = vcmask 261120
    %v200 = vsel %vm199, %v160, -inf
    %v201 = vsel %vm199, %v165, -inf
    %v202 = vsel %vm199, %v170, -inf
    %v203 = vmax.f32 %v200, %v202
    %v204 = vsel %vm199, %v175, -inf
    %v205 = vmax.f32 %v201, %v204
    %v206 = vsel %vm199, %v180, -inf
    %v207 = vmax.f32 %v203, %v206
    %v208 = vsel %vm199, %v185, -inf
    %v209 = vmax.f32 %v205, %v208
    %v210 = vsel %vm199, %v190, -inf
    %v211 = vmax.f32 %v207, %v210
    %v212 = vsel %vm199, %v195, -inf
    %v213 = vmax.f32 %v209, %v212
    %v214 = vmax.f32 %v211, %v213
    %v215 = vsel %vm199, %v162, -inf
    %v216 = vsel %vm199, %v167, -inf
    %v217 = vsel %vm199, %v172, -inf
    %v218 = vmax.f32 %v215, %v217
    %v219 = vsel %vm199, %v177, -inf
    %v220 = vmax.f32 %v216, %v219
    %v221 = vsel %vm199, %v182, -inf
    %v222 = vmax.f32 %v218, %v221
    %v223 = vsel %vm199, %v187, -inf
    %v224 = vmax.f32 %v220, %v223
    %v225 = vsel %vm199, %v192, -inf
    %v226 = vmax.f32 %v222, %v225
    %v227 = vsel %vm199, %v197, -inf
    %v228 = vmax.f32 %v224, %v227
    %v229 = vmax.f32 %v226, %v228
    %v232 = vunpack.c.l.b16 %v61
    %v233 = vunpack.c.l.b16 %v62
    %v234 = vpack.c.b16 %v233, %v232
    %236 = vmatpush.bf16.msra.mxu0 0
    %237 = vmatpush.bf16.msra.mxu0 0
    %238 = vmatpush.bf16.msra.mxu0 0
    %239 = vmatpush.bf16.msra.mxu0 0
    %240 = vmatpush.bf16.msra.mxu0 0
    %241 = vmatpush.bf16.msra.mxu0 0
    %242 = vmatpush.bf16.msra.mxu0 0
    %243 = vmatpush.bf16.msra.mxu0 %v234
    %244 = vmatmul.bf16.gmra.mxu0 %v127
    %v245 = vpop.f32.mrf.mxu0
    %v246 = vadd.f32 0.0, %v245
    %v247 = vpop.f32.mrf.mxu0
    %v248 = vadd.f32 0.0, %v247
    %249 = vmatmul.bf16.gmra.mxu0 %v130
    %v250 = vpop.f32.mrf.mxu0
    %v251 = vadd.f32 0.0, %v250
    %v252 = vpop.f32.mrf.mxu0
    %v253 = vadd.f32 0.0, %v252
    %254 = vmatmul.bf16.gmra.mxu0 %v133
    %v255 = vpop.f32.mrf.mxu0
    %v256 = vadd.f32 0.0, %v255
    %v257 = vpop.f32.mrf.mxu0
    %v258 = vadd.f32 0.0, %v257
    %259 = vmatmul.bf16.gmra.mxu0 %v136
    %v260 = vpop.f32.mrf.mxu0
    %v261 = vadd.f32 0.0, %v260
    %v262 = vpop.f32.mrf.mxu0
    %v263 = vadd.f32 0.0, %v262
    %264 = vmatmul.bf16.gmra.mxu0 %v139
    %v265 = vpop.f32.mrf.mxu0
    %v266 = vadd.f32 0.0, %v265
    %v267 = vpop.f32.mrf.mxu0
    %v268 = vadd.f32 0.0, %v267
    %269 = vmatmul.bf16.gmra.mxu0 %v142
    %v270 = vpop.f32.mrf.mxu0
    %v271 = vadd.f32 0.0, %v270
    %v272 = vpop.f32.mrf.mxu0
    %v273 = vadd.f32 0.0, %v272
    %274 = vmatmul.bf16.gmra.mxu0 %v145
    %v275 = vpop.f32.mrf.mxu0
    %v276 = vadd.f32 0.0, %v275
    %v277 = vpop.f32.mrf.mxu0
    %v278 = vadd.f32 0.0, %v277
    %279 = vmatmul.bf16.gmra.mxu0 %v148
    %v280 = vpop.f32.mrf.mxu0
    %v281 = vadd.f32 0.0, %v280
    %v282 = vpop.f32.mrf.mxu0
    %v283 = vadd.f32 0.0, %v282
    %284 = vdwg.mxu0
    %v285 = vsel %vm199, %v246, -inf
    %v286 = vsel %vm199, %v251, -inf
    %v287 = vsel %vm199, %v256, -inf
    %v288 = vmax.f32 %v285, %v287
    %v289 = vsel %vm199, %v261, -inf
    %v290 = vmax.f32 %v286, %v289
    %v291 = vsel %vm199, %v266, -inf
    %v292 = vmax.f32 %v288, %v291
    %v293 = vsel %vm199, %v271, -inf
    %v294 = vmax.f32 %v290, %v293
    %v295 = vsel %vm199, %v276, -inf
    %v296 = vmax.f32 %v292, %v295
    %v297 = vsel %vm199, %v281, -inf
    %v298 = vmax.f32 %v294, %v297
    %v299 = vmax.f32 %v296, %v298
    %v300 = vsel %vm199, %v248, -inf
    %v301 = vsel %vm199, %v253, -inf
    %v302 = vsel %vm199, %v258, -inf
    %v303 = vmax.f32 %v300, %v302
    %v304 = vsel %vm199, %v263, -inf
    %v305 = vmax.f32 %v301, %v304
    %v306 = vsel %vm199, %v268, -inf
    %v307 = vmax.f32 %v303, %v306
    %v308 = vsel %vm199, %v273, -inf
    %v309 = vmax.f32 %v305, %v308
    %v310 = vsel %vm199, %v278, -inf
    %v311 = vmax.f32 %v307, %v310
    %v312 = vsel %vm199, %v283, -inf
    %v313 = vmax.f32 %v309, %v312
    %v314 = vmax.f32 %v311, %v313
    %v315 = vunpack.c.l.bf16 %v59
    %v316 = vunpack.c.l.bf16 %v60
    %v317 = vunpack.c.l.bf16 %v61
    %v318 = vunpack.c.l.bf16 %v62
    %v319 = vmax.f32 %v315, 0.0
    %v320 = vmax.f32 %v316, 0.0
    %v321 = vmax.f32 %v317, 0.0
    %v322 = vmax.f32 %v318, 0.0
    %v323 = vpack.c.bf16 %v320, %v319
    %v324 = vpack.c.bf16 %v322, %v321
    %v325 = vmax.f32 %v214, 0.0
    %v326 = vmax.f32 %v229, 0.0
    %v327 = vmax.f32 %v299, 0.0
    %v328 = vmax.f32 %v314, 0.0
    %v329 = vpack.c.bf16 %v326, %v325
    %v330 = vpack.c.bf16 %v328, %v327
    %v331 = vld [vmem:[%s2] sm:$0xff]
    %v332 = vld [vmem:[%s2 + $0x8] sm:$0xff]
    %v333 = vld [vmem:[%s2 + $0x10] sm:$0xff]
    %v334 = vld [vmem:[%s2 + $0x18] sm:$0xff]
    %v335 = vld [vmem:[%s2 + $0x20] sm:$0xff]
    %v336 = vld [vmem:[%s2 + $0x28] sm:$0xff]
    %v337 = vld [vmem:[%s2 + $0x30] sm:$0xff]
    %v338 = vld [vmem:[%s2 + $0x38] sm:$0xff]
    %v339 = vld [vmem:[#allocation2] sm:$0xff]
    %v340 = vld [vmem:[#allocation2 + $0x8] sm:$0xff]
    %v341 = vld [vmem:[#allocation2 + $0x10] sm:$0xff]
    %v342 = vld [vmem:[#allocation2 + $0x18] sm:$0xff]
    %v343 = vld [vmem:[#allocation2 + $0x20] sm:$0xff]
    %v344 = vld [vmem:[#allocation2 + $0x28] sm:$0xff]
    %v345 = vld [vmem:[#allocation2 + $0x30] sm:$0xff]
    %v346 = vld [vmem:[#allocation2 + $0x38] sm:$0xff]
    %v355 = vunpack.c.l.b16 %v339
    %v356 = vunpack.c.h.b16 %v339
    %v357 = vunpack.c.l.b16 %v340
    %v358 = vunpack.c.h.b16 %v340
    %v359 = vunpack.c.l.b16 %v341
    %v360 = vunpack.c.h.b16 %v341
    %v361 = vunpack.c.l.b16 %v342
    %v362 = vunpack.c.h.b16 %v342
    %v363 = vunpack.c.l.b16 %v343
    %v364 = vunpack.c.h.b16 %v343
    %v365 = vunpack.c.l.b16 %v344
    %v366 = vunpack.c.h.b16 %v344
    %v367 = vunpack.c.l.b16 %v345
    %v368 = vunpack.c.h.b16 %v345
    %v369 = vunpack.c.l.b16 %v346
    %v370 = vunpack.c.h.b16 %v346
    %v371 = vpack.c.b16 %v359, %v355
    %v372 = vpack.c.b16 %v360, %v356
    %v373 = vpack.c.b16 %v361, %v357
    %v374 = vpack.c.b16 %v362, %v358
    %v375 = vpack.c.b16 %v367, %v363
    %v376 = vpack.c.b16 %v368, %v364
    %v377 = vpack.c.b16 %v369, %v365
    %v378 = vpack.c.b16 %v370, %v366
    %v388 = vsel %vm199, %v329, 0
    %v391 = vsel %vm199, %v330, 0
    %393 = vmatpush.bf16.msra.mxu0 0
    %394 = vmatpush.bf16.msra.mxu0 0
    %395 = vmatpush.bf16.msra.mxu0 0
    %396 = vmatpush.bf16.msra.mxu0 0
    %397 = vmatpush.bf16.msra.mxu0 0
    %398 = vmatpush.bf16.msra.mxu0 0
    %399 = vmatpush.bf16.msra.mxu0 %v375
    %400 = vmatpush.bf16.msra.mxu0 %v371
    %401 = vmatmul.bf16.gmra.mxu0 %v388
    %v402 = vpop.f32.mrf.mxu0
    %v403 = vadd.f32 0.0, %v402
    %v404 = vpop.f32.mrf.mxu0
    %v405 = vadd.f32 0.0, %v404
    %406 = vmatmul.bf16.gmra.mxu0 %v391
    %v407 = vpop.f32.mrf.mxu0
    %v408 = vadd.f32 0.0, %v407
    %v409 = vpop.f32.mrf.mxu0
    %v410 = vadd.f32 0.0, %v409
    %411 = vdwg.mxu0
    %412 = vmatpush.bf16.msra.mxu0 0
    %413 = vmatpush.bf16.msra.mxu0 0
    %414 = vmatpush.bf16.msra.mxu0 0
    %415 = vmatpush.bf16.msra.mxu0 0
    %416 = vmatpush.bf16.msra.mxu0 0
    %417 = vmatpush.bf16.msra.mxu0 0
    %418 = vmatpush.bf16.msra.mxu0 %v376
    %419 = vmatpush.bf16.msra.mxu0 %v372
    %420 = vmatmul.bf16.gmra.mxu0 %v388
    %v421 = vpop.f32.mrf.mxu0
    %v422 = vadd.f32 0.0, %v421
    %v423 = vpop.f32.mrf.mxu0
    %v424 = vadd.f32 0.0, %v423
    %425 = vmatmul.bf16.gmra.mxu0 %v391
    %v426 = vpop.f32.mrf.mxu0
    %v427 = vadd.f32 0.0, %v426
    %v428 = vpop.f32.mrf.mxu0
    %v429 = vadd.f32 0.0, %v428
    %430 = vdwg.mxu0
    %431 = vmatpush.bf16.msra.mxu0 0
    %432 = vmatpush.bf16.msra.mxu0 0
    %433 = vmatpush.bf16.msra.mxu0 0
    %434 = vmatpush.bf16.msra.mxu0 0
    %435 = vmatpush.bf16.msra.mxu0 0
    %436 = vmatpush.bf16.msra.mxu0 0
    %437 = vmatpush.bf16.msra.mxu0 %v377
    %438 = vmatpush.bf16.msra.mxu0 %v373
    %439 = vmatmul.bf16.gmra.mxu0 %v388
    %v440 = vpop.f32.mrf.mxu0
    %v441 = vadd.f32 0.0, %v440
    %v442 = vpop.f32.mrf.mxu0
    %v443 = vadd.f32 0.0, %v442
    %444 = vmatmul.bf16.gmra.mxu0 %v391
    %v445 = vpop.f32.mrf.mxu0
    %v446 = vadd.f32 0.0, %v445
    %v447 = vpop.f32.mrf.mxu0
    %v448 = vadd.f32 0.0, %v447
    %449 = vdwg.mxu0
    %450 = vmatpush.bf16.msra.mxu0 0
    %451 = vmatpush.bf16.msra.mxu0 0
    %452 = vmatpush.bf16.msra.mxu0 0
    %453 = vmatpush.bf16.msra.mxu0 0
    %454 = vmatpush.bf16.msra.mxu0 0
    %455 = vmatpush.bf16.msra.mxu0 0
    %456 = vmatpush.bf16.msra.mxu0 %v378
    %457 = vmatpush.bf16.msra.mxu0 %v374
    %458 = vmatmul.bf16.gmra.mxu0 %v388
    %v459 = vpop.f32.mrf.mxu0
    %v460 = vadd.f32 0.0, %v459
    %v461 = vpop.f32.mrf.mxu0
    %v462 = vadd.f32 0.0, %v461
    %463 = vmatmul.bf16.gmra.mxu0 %v391
    %v464 = vpop.f32.mrf.mxu0
    %v465 = vadd.f32 0.0, %v464
    %v466 = vpop.f32.mrf.mxu0
    %v467 = vadd.f32 0.0, %v466
    %468 = vdwg.mxu0
    %v477 = vunpack.c.l.b16 %v331
    %v478 = vunpack.c.h.b16 %v331
    %v479 = vunpack.c.l.b16 %v332
    %v480 = vunpack.c.h.b16 %v332
    %v481 = vunpack.c.l.b16 %v333
    %v482 = vunpack.c.h.b16 %v333
    %v483 = vunpack.c.l.b16 %v334
    %v484 = vunpack.c.h.b16 %v334
    %v485 = vunpack.c.l.b16 %v335
    %v486 = vunpack.c.h.b16 %v335
    %v487 = vunpack.c.l.b16 %v336
    %v488 = vunpack.c.h.b16 %v336
    %v489 = vunpack.c.l.b16 %v337
    %v490 = vunpack.c.h.b16 %v337
    %v491 = vunpack.c.l.b16 %v338
    %v492 = vunpack.c.h.b16 %v338
    %v493 = vpack.c.b16 %v481, %v477
    %v494 = vpack.c.b16 %v482, %v478
    %v495 = vpack.c.b16 %v483, %v479
    %v496 = vpack.c.b16 %v484, %v480
    %v497 = vpack.c.b16 %v489, %v485
    %v498 = vpack.c.b16 %v490, %v486
    %v499 = vpack.c.b16 %v491, %v487
    %v500 = vpack.c.b16 %v492, %v488
    %v510 = vsel %vm199, %v323, 0
    %v513 = vsel %vm199, %v324, 0
    %515 = vmatpush.bf16.msra.mxu0 0
    %516 = vmatpush.bf16.msra.mxu0 0
    %517 = vmatpush.bf16.msra.mxu0 0
    %518 = vmatpush.bf16.msra.mxu0 0
    %519 = vmatpush.bf16.msra.mxu0 0
    %520 = vmatpush.bf16.msra.mxu0 0
    %521 = vmatpush.bf16.msra.mxu0 %v497
    %522 = vmatpush.bf16.msra.mxu0 %v493
    %523 = vmatmul.bf16.gmra.mxu0 %v510
    %v524 = vpop.f32.mrf.mxu0
    %v525 = vadd.f32 %v403, %v524
    %v526 = vpop.f32.mrf.mxu0
    %v527 = vadd.f32 %v405, %v526
    %528 = vmatmul.bf16.gmra.mxu0 %v513
    %v529 = vpop.f32.mrf.mxu0
    %v530 = vadd.f32 %v408, %v529
    %v531 = vpop.f32.mrf.mxu0
    %v532 = vadd.f32 %v410, %v531
    %533 = vdwg.mxu0
    %534 = vmatpush.bf16.msra.mxu0 0
    %535 = vmatpush.bf16.msra.mxu0 0
    %536 = vmatpush.bf16.msra.mxu0 0
    %537 = vmatpush.bf16.msra.mxu0 0
    %538 = vmatpush.bf16.msra.mxu0 0
    %539 = vmatpush.bf16.msra.mxu0 0
    %540 = vmatpush.bf16.msra.mxu0 %v498
    %541 = vmatpush.bf16.msra.mxu0 %v494
    %542 = vmatmul.bf16.gmra.mxu0 %v510
    %v543 = vpop.f32.mrf.mxu0
    %v544 = vadd.f32 %v422, %v543
    %v545 = vpop.f32.mrf.mxu0
    %v546 = vadd.f32 %v424, %v545
    %547 = vmatmul.bf16.gmra.mxu0 %v513
    %v548 = vpop.f32.mrf.mxu0
    %v549 = vadd.f32 %v427, %v548
    %v550 = vpop.f32.mrf.mxu0
    %v551 = vadd.f32 %v429, %v550
    %552 = vdwg.mxu0
    %553 = vmatpush.bf16.msra.mxu0 0
    %554 = vmatpush.bf16.msra.mxu0 0
    %555 = vmatpush.bf16.msra.mxu0 0
    %556 = vmatpush.bf16.msra.mxu0 0
    %557 = vmatpush.bf16.msra.mxu0 0
    %558 = vmatpush.bf16.msra.mxu0 0
    %559 = vmatpush.bf16.msra.mxu0 %v499
    %560 = vmatpush.bf16.msra.mxu0 %v495
    %561 = vmatmul.bf16.gmra.mxu0 %v510
    %v562 = vpop.f32.mrf.mxu0
    %v563 = vadd.f32 %v441, %v562
    %v564 = vpop.f32.mrf.mxu0
    %v565 = vadd.f32 %v443, %v564
    %566 = vmatmul.bf16.gmra.mxu0 %v513
    %v567 = vpop.f32.mrf.mxu0
    %v568 = vadd.f32 %v446, %v567
    %v569 = vpop.f32.mrf.mxu0
    %v570 = vadd.f32 %v448, %v569
    %571 = vdwg.mxu0
    %572 = vmatpush.bf16.msra.mxu0 0
    %573 = vmatpush.bf16.msra.mxu0 0
    %574 = vmatpush.bf16.msra.mxu0 0
    %575 = vmatpush.bf16.msra.mxu0 0
    %576 = vmatpush.bf16.msra.mxu0 0
    %577 = vmatpush.bf16.msra.mxu0 0
    %578 = vmatpush.bf16.msra.mxu0 %v500
    %579 = vmatpush.bf16.msra.mxu0 %v496
    %580 = vmatmul.bf16.gmra.mxu0 %v510
    %v581 = vpop.f32.mrf.mxu0
    %v582 = vadd.f32 %v460, %v581
    %v583 = vpop.f32.mrf.mxu0
    %v584 = vadd.f32 %v462, %v583
    %585 = vmatmul.bf16.gmra.mxu0 %v513
    %v586 = vpop.f32.mrf.mxu0
    %v587 = vadd.f32 %v465, %v586
    %v588 = vpop.f32.mrf.mxu0
    %v589 = vadd.f32 %v467, %v588
    %590 = vdwg.mxu0
    %v591 = vld [vmem:[%s4] sm:$0xf]
    %v593 = vperm.slane %v591, 0
    %v594 = vperm.slane %v591, 1
    %v595 = vperm.slane %v591, 2
    %v596 = vperm.slane %v591, 3
    %v601 = vadd.f32 %v525, %v593
    %v602 = vadd.f32 %v544, %v594
    %v603 = vadd.f32 %v563, %v595
    %v604 = vadd.f32 %v582, %v596
    %v605 = vadd.f32 %v527, %v593
    %v606 = vadd.f32 %v546, %v594
    %v607 = vadd.f32 %v565, %v595
    %v608 = vadd.f32 %v584, %v596
    %v609 = vadd.f32 %v530, %v593
    %v610 = vadd.f32 %v549, %v594
    %v611 = vadd.f32 %v568, %v595
    %v612 = vadd.f32 %v587, %v596
    %v613 = vadd.f32 %v532, %v593
    %v614 = vadd.f32 %v551, %v594
    %v615 = vadd.f32 %v570, %v595
    %v616 = vadd.f32 %v589, %v596
    %v617 = vmax.f32 %v601, 0.0
    %v618 = vmax.f32 %v602, 0.0
    %v619 = vmax.f32 %v603, 0.0
    %v620 = vmax.f32 %v604, 0.0
    %v621 = vmax.f32 %v605, 0.0
    %v622 = vmax.f32 %v606, 0.0
    %v623 = vmax.f32 %v607, 0.0
    %v624 = vmax.f32 %v608, 0.0
    %v625 = vmax.f32 %v609, 0.0
    %v626 = vmax.f32 %v610, 0.0
    %v627 = vmax.f32 %v611, 0.0
    %v628 = vmax.f32 %v612, 0.0
    %v629 = vmax.f32 %v613, 0.0
    %v630 = vmax.f32 %v614, 0.0
    %v631 = vmax.f32 %v615, 0.0
    %v632 = vmax.f32 %v616, 0.0
    %v633 = vpack.c.bf16 %v621, %v617
    %v634 = vpack.c.bf16 %v622, %v618
    %v635 = vpack.c.bf16 %v623, %v619
    %v636 = vpack.c.bf16 %v624, %v620
    %v637 = vpack.c.bf16 %v629, %v625
    %v638 = vpack.c.bf16 %v630, %v626
    %v639 = vpack.c.bf16 %v631, %v627
    %v640 = vpack.c.bf16 %v632, %v628
    %v641 = vld [vmem:[#allocation4] sm:$0xf]
    %v642 = vld [vmem:[#allocation4 + $0x4] sm:$0xf]
    %v643 = vld [vmem:[#allocation4 + $0x8] sm:$0xf]
    %v644 = vld [vmem:[#allocation4 + $0xc] sm:$0xf]
    %v645 = vld [vmem:[#allocation4 + $0x10] sm:$0xf]
    %v646 = vld [vmem:[#allocation4 + $0x14] sm:$0xf]
    %v647 = vld [vmem:[#allocation4 + $0x18] sm:$0xf]
    %v648 = vld [vmem:[#allocation4 + $0x1c] sm:$0xf]
    %v649 = vld [vmem:[#allocation4 + $0x20] sm:$0xf]
    %v650 = vld [vmem:[#allocation4 + $0x24] sm:$0xf]
    %v651 = vld [vmem:[#allocation4 + $0x28] sm:$0xf]
    %v652 = vld [vmem:[#allocation4 + $0x2c] sm:$0xf]
    %v653 = vld [vmem:[#allocation4 + $0x30] sm:$0xf]
    %v654 = vld [vmem:[#allocation4 + $0x34] sm:$0xf]
    %v655 = vld [vmem:[#allocation4 + $0x38] sm:$0xf]
    %v656 = vld [vmem:[#allocation4 + $0x3c] sm:$0xf]
    %v657 = vld [vmem:[#allocation4 + $0x40] sm:$0xf]
    %v658 = vld [vmem:[#allocation4 + $0x44] sm:$0xf]
    %v659 = vld [vmem:[#allocation4 + $0x48] sm:$0xf]
    %v660 = vld [vmem:[#allocation4 + $0x4c] sm:$0xf]
    %v661 = vld [vmem:[#allocation4 + $0x50] sm:$0xf]
    %v662 = vld [vmem:[#allocation4 + $0x54] sm:$0xf]
    %v663 = vld [vmem:[#allocation4 + $0x58] sm:$0xf]
    %v664 = vld [vmem:[#allocation4 + $0x5c] sm:$0xf]
    %v665 = vld [vmem:[#allocation4 + $0x60] sm:$0xf]
    %v666 = vld [vmem:[#allocation4 + $0x64] sm:$0xf]
    %v667 = vld [vmem:[#allocation4 + $0x68] sm:$0xf]
    %v668 = vld [vmem:[#allocation4 + $0x6c] sm:$0xf]
    %v669 = vld [vmem:[#allocation4 + $0x70] sm:$0xf]
    %v670 = vld [vmem:[#allocation4 + $0x74] sm:$0xf]
    %v671 = vld [vmem:[#allocation4 + $0x78] sm:$0xf]
    %v672 = vld [vmem:[#allocation4 + $0x7c] sm:$0xf]
    %v673 = vld [vmem:[#allocation4 + $0x80] sm:$0xf]
    %v674 = vld [vmem:[#allocation4 + $0x84] sm:$0xf]
    %v675 = vld [vmem:[#allocation4 + $0x88] sm:$0xf]
    %v676 = vld [vmem:[#allocation4 + $0x8c] sm:$0xf]
    %v677 = vld [vmem:[#allocation4 + $0x90] sm:$0xf]
    %v678 = vld [vmem:[#allocation4 + $0x94] sm:$0xf]
    %v679 = vld [vmem:[#allocation4 + $0x98] sm:$0xf]
    %v680 = vld [vmem:[#allocation4 + $0x9c] sm:$0xf]
    %v681 = vld [vmem:[#allocation4 + $0xa0] sm:$0xf]
    %v682 = vld [vmem:[#allocation4 + $0xa4] sm:$0xf]
    %v683 = vld [vmem:[#allocation4 + $0xa8] sm:$0xf]
    %v684 = vld [vmem:[#allocation4 + $0xac] sm:$0xf]
    %v685 = vld [vmem:[#allocation4 + $0xb0] sm:$0xf]
    %v686 = vld [vmem:[#allocation4 + $0xb4] sm:$0xf]
    %v687 = vld [vmem:[#allocation4 + $0xb8] sm:$0xf]
    %v688 = vld [vmem:[#allocation4 + $0xbc] sm:$0xf]
    %v689 = vld [vmem:[#allocation4 + $0xc0] sm:$0xf]
    %v690 = vld [vmem:[#allocation4 + $0xc4] sm:$0xf]
    %v691 = vld [vmem:[#allocation4 + $0xc8] sm:$0xf]
    %v692 = vld [vmem:[#allocation4 + $0xcc] sm:$0xf]
    %v693 = vld [vmem:[#allocation4 + $0xd0] sm:$0xf]
    %v694 = vld [vmem:[#allocation4 + $0xd4] sm:$0xf]
    %v695 = vld [vmem:[#allocation4 + $0xd8] sm:$0xf]
    %v696 = vld [vmem:[#allocation4 + $0xdc] sm:$0xf]
    %v697 = vld [vmem:[#allocation4 + $0xe0] sm:$0xf]
    %v698 = vld [vmem:[#allocation4 + $0xe4] sm:$0xf]
    %v699 = vld [vmem:[#allocation4 + $0xe8] sm:$0xf]
    %v700 = vld [vmem:[#allocation4 + $0xec] sm:$0xf]
    %v701 = vld [vmem:[#allocation4 + $0xf0] sm:$0xf]
    %v702 = vld [vmem:[#allocation4 + $0xf4] sm:$0xf]
    %v703 = vld [vmem:[#allocation4 + $0xf8] sm:$0xf]
    %v704 = vld [vmem:[#allocation4 + $0xfc] sm:$0xf]
    %v705 = vld [vmem:[%s6] sm:$0x1]
    %v707 = vperm.slane %v705, 0
    %v773 = vunpack.c.l.b16 %v641
    %v774 = vunpack.c.l.b16 %v642
    %v775 = vunpack.c.l.b16 %v643
    %v776 = vunpack.c.l.b16 %v644
    %v777 = vunpack.c.l.b16 %v645
    %v778 = vunpack.c.l.b16 %v646
    %v779 = vunpack.c.l.b16 %v647
    %v780 = vunpack.c.l.b16 %v648
    %v781 = vunpack.c.l.b16 %v649
    %v782 = vunpack.c.l.b16 %v650
    %v783 = vunpack.c.l.b16 %v651
    %v784 = vunpack.c.l.b16 %v652
    %v785 = vunpack.c.l.b16 %v653
    %v786 = vunpack.c.l.b16 %v654
    %v787 = vunpack.c.l.b16 %v655
    %v788 = vunpack.c.l.b16 %v656
    %v789 = vunpack.c.l.b16 %v657
    %v790 = vunpack.c.l.b16 %v658
    %v791 = vunpack.c.l.b16 %v659
    %v792 = vunpack.c.l.b16 %v660
    %v793 = vunpack.c.l.b16 %v661
    %v794 = vunpack.c.l.b16 %v662
    %v795 = vunpack.c.l.b16 %v663
    %v796 = vunpack.c.l.b16 %v664
    %v797 = vunpack.c.l.b16 %v665
    %v798 = vunpack.c.l.b16 %v666
    %v799 = vunpack.c.l.b16 %v667
    %v800 = vunpack.c.l.b16 %v668
    %v801 = vunpack.c.l.b16 %v669
    %v802 = vunpack.c.l.b16 %v670
    %v803 = vunpack.c.l.b16 %v671
    %v804 = vunpack.c.l.b16 %v672
    %v805 = vunpack.c.l.b16 %v673
    %v806 = vunpack.c.l.b16 %v674
    %v807 = vunpack.c.l.b16 %v675
    %v808 = vunpack.c.l.b16 %v676
    %v809 = vunpack.c.l.b16 %v677
    %v810 = vunpack.c.l.b16 %v678
    %v811 = vunpack.c.l.b16 %v679
    %v812 = vunpack.c.l.b16 %v680
    %v813 = vunpack.c.l.b16 %v681
    %v814 = vunpack.c.l.b16 %v682
    %v815 = vunpack.c.l.b16 %v683
    %v816 = vunpack.c.l.b16 %v684
    %v817 = vunpack.c.l.b16 %v685
    %v818 = vunpack.c.l.b16 %v686
    %v819 = vunpack.c.l.b16 %v687
    %v820 = vunpack.c.l.b16 %v688
    %v821 = vunpack.c.l.b16 %v689
    %v822 = vunpack.c.l.b16 %v690
    %v823 = vunpack.c.l.b16 %v691
    %v824 = vunpack.c.l.b16 %v692
    %v825 = vunpack.c.l.b16 %v693
    %v826 = vunpack.c.l.b16 %v694
    %v827 = vunpack.c.l.b16 %v695
    %v828 = vunpack.c.l.b16 %v696
    %v829 = vunpack.c.l.b16 %v697
    %v830 = vunpack.c.l.b16 %v698
    %v831 = vunpack.c.l.b16 %v699
    %v832 = vunpack.c.l.b16 %v700
    %v833 = vunpack.c.l.b16 %v701
    %v834 = vunpack.c.l.b16 %v702
    %v835 = vunpack.c.l.b16 %v703
    %v836 = vunpack.c.l.b16 %v704
    %v837 = vpack.c.b16 %v774, %v773
    %v838 = vpack.c.b16 %v776, %v775
    %v839 = vpack.c.b16 %v778, %v777
    %v840 = vpack.c.b16 %v780, %v779
    %v841 = vpack.c.b16 %v782, %v781
    %v842 = vpack.c.b16 %v784, %v783
    %v843 = vpack.c.b16 %v786, %v785
    %v844 = vpack.c.b16 %v788, %v787
    %v845 = vpack.c.b16 %v790, %v789
    %v846 = vpack.c.b16 %v792, %v791
    %v847 = vpack.c.b16 %v794, %v793
    %v848 = vpack.c.b16 %v796, %v795
    %v849 = vpack.c.b16 %v798, %v797
    %v850 = vpack.c.b16 %v800, %v799
    %v851 = vpack.c.b16 %v802, %v801
    %v852 = vpack.c.b16 %v804, %v803
    %v853 = vpack.c.b16 %v806, %v805
    %v854 = vpack.c.b16 %v808, %v807
    %v855 = vpack.c.b16 %v810, %v809
    %v856 = vpack.c.b16 %v812, %v811
    %v857 = vpack.c.b16 %v814, %v813
    %v858 = vpack.c.b16 %v816, %v815
    %v859 = vpack.c.b16 %v818, %v817
    %v860 = vpack.c.b16 %v820, %v819
    %v861 = vpack.c.b16 %v822, %v821
    %v862 = vpack.c.b16 %v824, %v823
    %v863 = vpack.c.b16 %v826, %v825
    %v864 = vpack.c.b16 %v828, %v827
    %v865 = vpack.c.b16 %v830, %v829
    %v866 = vpack.c.b16 %v832, %v831
    %v867 = vpack.c.b16 %v834, %v833
    %v868 = vpack.c.b16 %v836, %v835
    %901 = vmatpush.bf16.msra.mxu0 %v844
    %902 = vmatpush.bf16.msra.mxu0 %v843
    %903 = vmatpush.bf16.msra.mxu0 %v842
    %904 = vmatpush.bf16.msra.mxu0 %v841
    %905 = vmatpush.bf16.msra.mxu0 %v840
    %906 = vmatpush.bf16.msra.mxu0 %v839
    %907 = vmatpush.bf16.msra.mxu0 %v838
    %908 = vmatpush.bf16.msra.mxu0 %v837
    %909 = vmatmul.bf16.gmra.mxu0 %v633
    %v910 = vpop.f32.mrf.mxu0
    %v911 = vadd.f32 %v707, %v910
    %v912 = vpop.f32.mrf.mxu0
    %v913 = vadd.f32 %v707, %v912
    %914 = vmatmul.bf16.gmra.mxu0 %v637
    %v915 = vpop.f32.mrf.mxu0
    %v916 = vadd.f32 %v707, %v915
    %v917 = vpop.f32.mrf.mxu0
    %v918 = vadd.f32 %v707, %v917
    %919 = vdwg.mxu0
    %920 = vmatpush.bf16.msra.mxu0 %v852
    %921 = vmatpush.bf16.msra.mxu0 %v851
    %922 = vmatpush.bf16.msra.mxu0 %v850
    %923 = vmatpush.bf16.msra.mxu0 %v849
    %924 = vmatpush.bf16.msra.mxu0 %v848
    %925 = vmatpush.bf16.msra.mxu0 %v847
    %926 = vmatpush.bf16.msra.mxu0 %v846
    %927 = vmatpush.bf16.msra.mxu0 %v845
    %928 = vmatmul.bf16.gmra.mxu0 %v634
    %v929 = vpop.f32.mrf.mxu0
    %v930 = vadd.f32 %v911, %v929
    %v931 = vpop.f32.mrf.mxu0
    %v932 = vadd.f32 %v913, %v931
    %933 = vmatmul.bf16.gmra.mxu0 %v638
    %v934 = vpop.f32.mrf.mxu0
    %v935 = vadd.f32 %v916, %v934
    %v936 = vpop.f32.mrf.mxu0
    %v937 = vadd.f32 %v918, %v936
    %938 = vdwg.mxu0
    %939 = vmatpush.bf16.msra.mxu0 %v860
    %940 = vmatpush.bf16.msra.mxu0 %v859
    %941 = vmatpush.bf16.msra.mxu0 %v858
    %942 = vmatpush.bf16.msra.mxu0 %v857
    %943 = vmatpush.bf16.msra.mxu0 %v856
    %944 = vmatpush.bf16.msra.mxu0 %v855
    %945 = vmatpush.bf16.msra.mxu0 %v854
    %946 = vmatpush.bf16.msra.mxu0 %v853
    %947 = vmatmul.bf16.gmra.mxu0 %v635
    %v948 = vpop.f32.mrf.mxu0
    %v949 = vadd.f32 %v930, %v948
    %v950 = vpop.f32.mrf.mxu0
    %v951 = vadd.f32 %v932, %v950
    %952 = vmatmul.bf16.gmra.mxu0 %v639
    %v953 = vpop.f32.mrf.mxu0
    %v954 = vadd.f32 %v935, %v953
    %v955 = vpop.f32.mrf.mxu0
    %v956 = vadd.f32 %v937, %v955
    %957 = vdwg.mxu0
    %958 = vmatpush.bf16.msra.mxu0 %v868
    %959 = vmatpush.bf16.msra.mxu0 %v867
    %960 = vmatpush.bf16.msra.mxu0 %v866
    %961 = vmatpush.bf16.msra.mxu0 %v865
    %962 = vmatpush.bf16.msra.mxu0 %v864
    %963 = vmatpush.bf16.msra.mxu0 %v863
    %964 = vmatpush.bf16.msra.mxu0 %v862
    %965 = vmatpush.bf16.msra.mxu0 %v861
    %966 = vmatmul.bf16.gmra.mxu0 %v636
    %v967 = vpop.f32.mrf.mxu0
    %v968 = vadd.f32 %v949, %v967
    %v969 = vpop.f32.mrf.mxu0
    %v970 = vadd.f32 %v951, %v969
    %971 = vmatmul.bf16.gmra.mxu0 %v640
    %v972 = vpop.f32.mrf.mxu0
    %v973 = vadd.f32 %v954, %v972
    %v974 = vpop.f32.mrf.mxu0
    %v975 = vadd.f32 %v956, %v974
    %976 = vdwg.mxu0
    %977 = vst [vmem:[%s7] sm:$0xff] %v968
    %978 = vst [vmem:[%s7 + $0x8] sm:$0xff] %v970
    %979 = vst [vmem:[%s7 + $0x10] sm:$0xff] %v973
    %980 = vst [vmem:[%s7 + $0x18] sm:$0xff] %v975
    // Predicated region
    $region38: #{stack_tgm_apply.1} parent=1 // pred_check
      _
    $region39: #{stack_tgm_apply.1} parent=1 // pred_check_branch
      %982 = sbr.rel (0) target = $region41
    $region40: #{stack_tgm_apply.1} parent=1 // pred_region
      _
    $region41: #{stack_tgm_apply.1} parent=1 // pred_fallthru
      _
    // Predicated region
    $region42: #{stack_tgm_apply.1} parent=1 // pred_check
      _
    $region43: #{stack_tgm_apply.1} parent=1 // pred_check_branch
      %984 = sbr.rel (0) target = $region45
    $region44: #{stack_tgm_apply.1} parent=1 // pred_region
      _
    $region45: #{stack_tgm_apply.1} parent=1 // pred_fallthru
      _
    %985 = vsyncpa [#allocation3], 1
    %986 = vsyncpa [#allocation5], 1

</llo_original>
